<compile_context>
chip_gen: v5e
topology: v5e:2x2
jax: 0.10.0
libtpu: 0.0.40
codegen_flags: <defaults>
</compile_context>

<pallas_src>
import functools
import math

import jax
import jax.numpy as jnp
from jax.experimental import pallas as pl
from jax.experimental.pallas import tpu as pltpu


# ------------------------------ kernels -------------------------------------

def _loc_attn_kernel_sigmoid(x_ref, p_ref, o_ref):
    # (TM, L) * (1, L): sublane broadcast on the VPU; the exp inside sigmoid
    # uses the EUP slot, idle under the HBM-bound load/store stream.
    prod = x_ref[...] * p_ref[...]
    o_ref[...] = jax.nn.sigmoid(prod).astype(o_ref.dtype)


def _loc_attn_kernel_nosig(x_ref, p_ref, o_ref):
    o_ref[...] = (x_ref[...] * p_ref[...]).astype(o_ref.dtype)


# --------------------------- tiling helpers ----------------------------------

def _round_up(x, m):
    return (x + m - 1) // m * m


def _sublane_multiple(dtype):
    # Sub-32-bit dtypes pack along sublanes: f32 -> 8, bf16 -> 16, int8/fp8 -> 32.
    return max(8, 32 // jnp.dtype(dtype).itemsize)


@functools.lru_cache(maxsize=None)
def _gen_tuning():
    """(block_target_bytes, vmem_limit_bytes) tuned per TPU generation."""
    try:
        kind = jax.devices()[0].device_kind.lower()
    except Exception:
        kind = ""
    if "v7" in kind:
        # ~3.2 TB/s per-TC HBM: 8 MiB blocks keep the fixed per-step overhead
        # under ~10%. 2 in-bufs + 2 out-bufs = 32 MiB, safe under a 48 MiB cap
        # (physical VMEM on v7x is 64 MiB).
        return 8 * 1024 * 1024, 48 * 1024 * 1024
    if "v6" in kind:
        return 4 * 1024 * 1024, 32 * 1024 * 1024
    # v5e / unknown: 4 MiB blocks require raising the 16 MiB scoped default
    # (physical VMEM is 128 MiB, so 32 MiB is comfortably safe).
    return 4 * 1024 * 1024, 32 * 1024 * 1024


def _choose_tm(rows, cols, itemsize, sub, target_bytes):
    """Row-block size: ~target_bytes per input block, a multiple of `sub`,
    never exceeding `rows`, and >= 4 grid steps when rows allow (>= 2 per v7x
    TensorCore so double-buffering survives megacore sharding)."""
    if rows <= sub:
        return int(rows)                      # one full-extent block
    rows_pad = _round_up(rows, sub)
    tm = max(sub, (target_bytes // max(1, cols * itemsize)) // sub * sub)
    if rows_pad >= 4 * sub:
        tm = min(tm, max(sub, (rows_pad // 4) // sub * sub))
    tm = min(tm, rows // sub * sub)           # remainder handled by grid masking
    return int(tm)


# ------------------------------ wrapper --------------------------------------

def _plain_forward(x, patch_matrix, no_sigmoid):
    prod = x * patch_matrix.astype(x.dtype)   # (1,h,w) broadcasts over (bt,c,h,w)
    out = prod if no_sigmoid else jax.nn.sigmoid(prod)
    return out.astype(x.dtype)


def _pallas_forward(x, patch_matrix, no_sigmoid):
    bt, c, h, w = x.shape
    hw = h * w
    rows0 = bt * c
    dtype = x.dtype
    itemsize = jnp.dtype(dtype).itemsize
    sub = _sublane_multiple(dtype)

    # --- lane-dense repack ---------------------------------------------------
    # Group m consecutive (h, w) images per flattened row so the lane width
    # L = hw*m is a multiple of 128 (unmasked vld/vst for any h, w).
    m = 128 // math.gcd(hw, 128)
    L = hw * m
    rows_p = _round_up(rows0, m)              # images, padded to a whole group
    R = rows_p // m                           # kernel rows (each = m images)

    target_bytes, vmem_limit = _gen_tuning()
    tm = _choose_tm(R, L, itemsize, sub, target_bytes)

    # Pathological h*w (odd / huge): even the minimal lane-dense block would
    # blow the VMEM budget -> let XLA handle it.
    # TODO(synk): add a padded-cols Pallas path for such shapes.
    if 4 * tm * L * itemsize + L * itemsize > vmem_limit:
        return _plain_forward(x, patch_matrix, no_sigmoid)

    x2d = x.reshape(rows0, hw)
    if rows_p != rows0:
        # Zero rows flow through the kernel (sigmoid(0)=0.5) and are sliced
        # off below -- harmless, bounded by < 128 extra rows.
        x2d = jnp.pad(x2d, ((0, rows_p - rows0), (0, 0)))
    x2d = x2d.reshape(R, L)

    p_row = patch_matrix.reshape(1, hw).astype(dtype)
    if m > 1:
        p_row = jnp.tile(p_row, (1, m))       # (1, L)

    grid = (pl.cdiv(R, tm),)
    kernel = _loc_attn_kernel_nosig if no_sigmoid else _loc_attn_kernel_sigmoid

    cost = pl.CostEstimate(
        flops=3 * rows0 * hw,
        transcendentals=0 if no_sigmoid else rows0 * hw,
        bytes_accessed=2 * rows0 * hw * itemsize + hw * itemsize,
    )

    out2d = pl.pallas_call(
        kernel,
        out_shape=jax.ShapeDtypeStruct((R, L), dtype),
        grid_spec=pltpu.PrefetchScalarGridSpec(
            num_scalar_prefetch=0,
            grid=grid,
            in_specs=[
                # Streaming (TM, L) slab of grouped images per step.
                pl.BlockSpec((tm, L), lambda i: (i, 0)),
                # Single resident patch row, same VMEM block every step.
                pl.BlockSpec((1, L), lambda i: (0, 0)),
            ],
            out_specs=pl.BlockSpec((tm, L), lambda i: (i, 0)),
        ),
        compiler_params=pltpu.CompilerParams(
            dimension_semantics=("parallel",),
            vmem_limit_bytes=vmem_limit,
        ),
        cost_estimate=cost,
    )(x2d, p_row)

    out = out2d.reshape(rows_p, hw)
    if rows_p != rows0:
        out = out[:rows0]
    return out.reshape(bt, c, h, w)


@functools.partial(jax.jit, static_argnames=("no_sigmoid", "force_pallas"))
def location_attention_layer(x, patch_matrix, *, no_sigmoid=False,
                             force_pallas=False):
    """x: (bt, c, h, w); patch_matrix: (1, h, w). Matches the PyTorch forward."""
    bt, c, h, w = x.shape
    assert patch_matrix.shape == (1, h, w), \
        "kernel_size/kernel_size2 must equal (h, w)"

    total_bytes = x.size * jnp.dtype(x.dtype).itemsize
    if not force_pallas and total_bytes < (1 << 20):
        # Small-input fast path: a single-step pallas_call is dominated by the
        # fixed call + per-step overhead; plain XLA fusion is strictly faster.
        return _plain_forward(x, patch_matrix, no_sigmoid)

    return _pallas_forward(x, patch_matrix, no_sigmoid)


def _reference(x, patch_matrix, no_sigmoid=False):
    bt, c, h, w = x.shape
    prod = x.reshape(-1, h, w) * patch_matrix     # broadcast over bt*c
    if not no_sigmoid:
        prod = jax.nn.sigmoid(prod)
    return prod.reshape(bt, c, h, w)


if __name__ == "__main__":
    # Small shapes consistent with the module: batch=2, channels=4, spatial=16x16.
    bt, c, h, w = 2, 4, 16, 16

    key = jax.random.PRNGKey(0)
    kx, kp = jax.random.split(key)
    x = jax.random.normal(kx, (bt, c, h, w), dtype=jnp.float32)
    # Deterministic "torch.randn(1, kernel_size, kernel_size2)" analogue.
    patch_matrix = jax.random.normal(kp, (1, h, w), dtype=jnp.float32)

    # Default path (with sigmoid) -- force the Pallas kernel so it is exercised
    # even though this demo shape is below the fast-path threshold.
    out = jax.block_until_ready(
        location_attention_layer(x, patch_matrix, no_sigmoid=False,
                                 force_pallas=True))
    ref = _reference(x, patch_matrix, no_sigmoid=False)
    assert out.shape == (bt, c, h, w)
    assert jnp.allclose(out, ref, atol=1e-6, rtol=1e-6), "sigmoid path mismatch"

    # no_sigmoid path through the Pallas kernel.
    out_ns = jax.block_until_ready(
        location_attention_layer(x, patch_matrix, no_sigmoid=True,
                                 force_pallas=True))
    ref_ns = _reference(x, patch_matrix, no_sigmoid=True)
    assert jnp.allclose(out_ns, ref_ns, atol=1e-6, rtol=1e-6), \
        "no_sigmoid path mismatch"

    # Auto path (takes the plain-JAX fast path at this tiny size).
    out_auto = jax.block_until_ready(location_attention_layer(x, patch_matrix))
    assert jnp.allclose(out_auto, ref, atol=1e-6, rtol=1e-6), "fast path mismatch"

    # Non-128-multiple spatial size (14x14) through the Pallas path to validate
    # the lane-dense repack + row padding.
    h2, w2 = 14, 14
    x2 = jax.random.normal(kx, (2, 6, h2, w2), dtype=jnp.float32)
    p2 = jax.random.normal(kp, (1, h2, w2), dtype=jnp.float32)
    out2 = jax.block_until_ready(
        location_attention_layer(x2, p2, force_pallas=True))
    ref2 = _reference(x2, p2)
    assert jnp.allclose(out2, ref2, atol=1e-6, rtol=1e-6), "14x14 path mismatch"

    print("KERNEL_OK")
</pallas_src>

<mosaic_0001>
module attributes {stable_mosaic.version = 11 : i64} {
  func.func @_loc_attn_kernel_sigmoid(%arg0: i32, %arg1: memref<8x256xf32, #tpu.memory_space<vmem>>, %arg2: memref<1x256xf32, #tpu.memory_space<vmem>>, %arg3: memref<8x256xf32, #tpu.memory_space<vmem>>) attributes {dimension_semantics = [#tpu.dimension_semantics<parallel>], iteration_bounds = array<i64: 1>, scalar_prefetch = 0 : i64, scratch_operands = 0 : i64, tpu.core_type = #tpu.core_type<tc>, window_params = [{transform_indices = @transform_0, window_bounds = array<i64: 8, 256>}, {pipeline_mode = #tpu.pipeline_mode<synchronous>, transform_indices = @transform_1, window_bounds = array<i64: 1, 256>}, {transform_indices = @transform_2, window_bounds = array<i64: 8, 256>}]} {
    %c0 = arith.constant 0 : index
    %c0_0 = arith.constant 0 : index
    %0 = vector.load %arg1[%c0, %c0_0] : memref<8x256xf32, #tpu.memory_space<vmem>>, vector<8x256xf32>
    %c0_1 = arith.constant 0 : index
    %c0_2 = arith.constant 0 : index
    %1 = vector.load %arg2[%c0_1, %c0_2] : memref<1x256xf32, #tpu.memory_space<vmem>>, vector<1x256xf32>
    %2 = vector.broadcast %1 : vector<1x256xf32> to vector<8x256xf32>
    %3 = arith.mulf %0, %2 : vector<8x256xf32>
    %4 = arith.negf %3 : vector<8x256xf32>
    %5 = math.exp %4 : vector<8x256xf32>
    %cst = arith.constant 1.000000e+00 : f32
    %6 = vector.broadcast %cst : f32 to vector<8x256xf32>
    %7 = arith.addf %6, %5 : vector<8x256xf32>
    %8 = arith.divf %6, %7 : vector<8x256xf32>
    %c0_3 = arith.constant 0 : index
    %c0_4 = arith.constant 0 : index
    %9 = vector.load %arg3[%c0_3, %c0_4] : memref<8x256xf32, #tpu.memory_space<vmem>>, vector<8x256xf32>
    tpu.vector_store %arg3[%c0_3, %c0_4], %8 {strides = array<i32>} : memref<8x256xf32, #tpu.memory_space<vmem>>, vector<8x256xf32>,
    return
  }
  func.func @transform_0(%arg0: i32) -> (i32, i32) {
    %c0_i32 = arith.constant 0 : i32
    %c0_i32_0 = arith.constant 0 : i32
    return %arg0, %c0_i32 : i32, i32
  }
  func.func @transform_1(%arg0: i32) -> (i32, i32) {
    %c0_i32 = arith.constant 0 : i32
    %c0_i32_0 = arith.constant 0 : i32
    %c0_i32_1 = arith.constant 0 : i32
    return %c0_i32, %c0_i32_0 : i32, i32
  }
  func.func @transform_2(%arg0: i32) -> (i32, i32) {
    %c0_i32 = arith.constant 0 : i32
    %c0_i32_0 = arith.constant 0 : i32
    return %arg0, %c0_i32 : i32, i32
  }
}

</mosaic_0001>

<llo_original>
// kernel: location_attention_layer.1
$region0: #{location_attention_layer.1}
  #allocation0 [shape = 'u32[]', space=smem, size = 0x4, offset = 0x4, fixed_abs, tag = 'smem constant byte address 0x4 - core index']
  #allocation1 [shape = 'u32[72,128]{1,0:T(1,128)}', space=vmem, size = 0x9000, scoped, tag = 'internal scratch']
  %s0 = inlined_call_operand.vmem [shape: f32[8,256], index: 0, kind: input, shape index: {}]
  %s1 = inlined_call_operand.vmem [shape: f32[1,256], index: 1, kind: input, shape index: {}]
  %s2 = inlined_call_operand.vmem [shape: f32[8,256], index: 2, kind: output, shape index: {}]
  %s3 = sld [smem:[#allocation0]]
  $region18: #{location_attention_layer.1} parent=0
    _
  %s5 = ssub.s32 1, %s3
  %s6 = scalar_select 0, %s5, %s3
  // Predicated region
  $region2: #{location_attention_layer.1} parent=0 // pred_check
    _
  $region3: #{location_attention_layer.1} parent=0 // pred_check_branch
    %8 = sbr.rel (0) target = $region5
  $region4: #{location_attention_layer.1} parent=0 // pred_region
    _
  $region5: #{location_attention_layer.1} parent=0 // pred_fallthru
    _
  // Predicated region
  $region6: #{location_attention_layer.1} parent=0 // pred_check
    _
  $region7: #{location_attention_layer.1} parent=0 // pred_check_branch
    %10 = sbr.rel (0) target = $region9
  $region8: #{location_attention_layer.1} parent=0 // pred_region
    _
  $region9: #{location_attention_layer.1} parent=0 // pred_fallthru
    _
  %v11 = vld [vmem:[%s0] sm:$0xff]
  %v12 = vld [vmem:[%s0 + $0x8] sm:$0xff]
  %v13 = vld [vmem:[%s1] sm:$0x3]
  %v15 = vperm.slane %v13, 0
  %v16 = vperm.slane %v13, 1
  %v19 = vmul.f32 %v11, %v15
  %v20 = vmul.f32 %v12, %v16
  %v21 = vxor.u32 %v19, 2147483648
  %v22 = vxor.u32 %v20, 2147483648
  %v23 = vmul.f32 %v21, 1.442695
  %v24 = vpow.pop %v23
  %v25 = vmul.f32 %v22, 1.442695
  %v26 = vpow.pop %v25
  %v27 = vadd.f32 %v24, 1.0
  %v28 = vadd.f32 %v26, 1.0
  %v29 = vrcp.pop %v27
  %v30 = vmul.f32 %v27, %v29
  %v31 = vsub.f32 1.0, %v30
  %v32 = vmul.f32 %v29, %v31
  %v33 = vadd.f32 %v29, %v32
  %vm34 = vweird.f32 %v27
  %vm35 = vweird.f32 %v29
  %vm36 = vmor %vm34, %vm35
  %v37 = vsel %vm36, %v29, %v33
  %v38 = vand.u32 2147483647, %v27
  %vm39 = vcmp.eq.f32.partialorder %v38, 8.507059e+37
  %v40 = vand.u32 %v27, 2147483648
  %v41 = vor.u32 1.1754944e-38, %v40
  %v42 = vsel %vm39, %v41, %v37
  %v43 = vmul.f32 1.0, %v42
  %v44 = vrcp.pop %v28
  %v45 = vmul.f32 %v28, %v44
  %v46 = vsub.f32 1.0, %v45
  %v47 = vmul.f32 %v44, %v46
  %v48 = vadd.f32 %v44, %v47
  %vm49 = vweird.f32 %v28
  %vm50 = vweird.f32 %v44
  %vm51 = vmor %vm49, %vm50
  %v52 = vsel %vm51, %v44, %v48
  %v53 = vand.u32 2147483647, %v28
  %vm54 = vcmp.eq.f32.partialorder %v53, 8.507059e+37
  %v55 = vand.u32 %v28, 2147483648
  %v56 = vor.u32 1.1754944e-38, %v55
  %v57 = vsel %vm54, %v56, %v52
  %v58 = vmul.f32 1.0, %v57
  %59 = vst [vmem:[%s2] sm:$0xff] %v43
  %60 = vst [vmem:[%s2 + $0x8] sm:$0xff] %v58
  // Predicated region
  $region10: #{location_attention_layer.1} parent=0 // pred_check
    _
  $region11: #{location_attention_layer.1} parent=0 // pred_check_branch
    %62 = sbr.rel (0) target = $region13
  $region12: #{location_attention_layer.1} parent=0 // pred_region
    _
  $region13: #{location_attention_layer.1} parent=0 // pred_fallthru
    _
  // Predicated region
  $region14: #{location_attention_layer.1} parent=0 // pred_check
    _
  $region15: #{location_attention_layer.1} parent=0 // pred_check_branch
    %64 = sbr.rel (0) target = $region17
  $region16: #{location_attention_layer.1} parent=0 // pred_region
    _
  $region17: #{location_attention_layer.1} parent=0 // pred_fallthru
    _

</llo_original>
